<compile_context>
chip_gen: v7x
topology: tpu7x:2x2x1
jax: 0.10.0
libtpu: 0.0.40
codegen_flags: <defaults>
</compile_context>

<pallas_src>
import jax
import jax.numpy as jnp
from jax.experimental import pallas as pl
from jax.experimental.pallas import tpu as pltpu

BS_SIZE = 256   # discriminator input features
D_SIZE = 64     # hidden size
TM_MAX = 2048   # default max batch tile (2 MiB f32 x-tile, 4 MiB double-buffered)


def _round_up(n, m):
    return ((n + m - 1) // m) * m


# ---------------------------------------------------------------------------
# Pallas kernel: fused Linear -> ReLU -> Linear -> Sigmoid for one batch tile
# ---------------------------------------------------------------------------

def _disc_kernel(x_ref, w1_ref, bw_ref, b2_ref, o_ref):
    # x (TM, BS) f32, w1 (BS, D), bw (2, D) = [b1 ; fc2 weight row], b2 SMEM scalar.
    h = jnp.dot(x_ref[...], w1_ref[...], preferred_element_type=jnp.float32)  # MXU
    h = jnp.maximum(h + bw_ref[0:1, :], 0.0)                                  # bias + ReLU (VPU)
    # fc2 has a single output unit: lane-dense multiply + lane reduction (XLU)
    # instead of a lane-sparse (D, 1) MXU matmul.
    y = jnp.sum(h * bw_ref[1:2, :], axis=-1, keepdims=True) + b2_ref[0, 0]    # (TM, 1)
    o_ref[...] = jax.nn.sigmoid(y).astype(o_ref.dtype)


def belief_state_discriminator(x, params, *, tm=None):
    """x: (M, BS_SIZE) f32 -> (M, 1) f32, matching the PyTorch module's forward."""
    M, K = x.shape
    assert K == BS_SIZE, (M, K)

    # Adaptive batch tile: no larger than needed (rounded to a sublane multiple),
    # capped at TM_MAX.  No wrapper-side padding of x: the last block may be
    # ragged and Pallas masks the out-of-range output writes.
    if tm is None:
        tm = TM_MAX
    tm = max(8, _round_up(min(tm, _round_up(M, 8)), 8))
    n_tiles = pl.cdiv(M, tm)

    return pl.pallas_call(
        _disc_kernel,
        out_shape=jax.ShapeDtypeStruct((M, 1), jnp.float32),
        grid=(n_tiles,),
        in_specs=[
            pl.BlockSpec((tm, BS_SIZE), lambda i: (i, 0)),        # x tile (pipelined)
            pl.BlockSpec((BS_SIZE, D_SIZE), lambda i: (0, 0)),    # W1 (resident)
            pl.BlockSpec((2, D_SIZE), lambda i: (0, 0)),          # [b1 ; fc2 weight row]
            pl.BlockSpec(memory_space=pltpu.MemorySpace.SMEM),    # b2 scalar
        ],
        out_specs=pl.BlockSpec((tm, 1), lambda i: (i, 0)),
        compiler_params=pltpu.CompilerParams(
            dimension_semantics=("parallel",),    # megacore-shardable on v7x
            vmem_limit_bytes=32 * 1024 * 1024,
        ),
    )(x, params["w1"], params["bw"], params["b2"])


# ---------------------------------------------------------------------------
# Parameters: PyTorch nn.Linear default init + one-time relayout for the kernel
# ---------------------------------------------------------------------------

def init_params(key):
    """PyTorch-layout parameters with nn.Linear's default uniform init."""
    ks = jax.random.split(key, 4)

    def u(k, shape, fan_in):
        bound = 1.0 / float(fan_in) ** 0.5
        return jax.random.uniform(k, shape, jnp.float32, -bound, bound)

    return {
        "fc1_w": u(ks[0], (D_SIZE, BS_SIZE), BS_SIZE),  # (64, 256)
        "fc1_b": u(ks[1], (D_SIZE,), BS_SIZE),          # (64,)
        "fc2_w": u(ks[2], (1, D_SIZE), D_SIZE),         # (1, 64)
        "fc2_b": u(ks[3], (1,), D_SIZE),                # (1,)
    }


def pack_params(p):
    """One-time relayout so the per-call jit path does no weight transposes."""
    return {
        "w1": p["fc1_w"].T,                                                # (256, 64)
        "bw": jnp.concatenate([p["fc1_b"].reshape(1, D_SIZE),
                               p["fc2_w"].reshape(1, D_SIZE)], axis=0),    # (2, 64)
        "b2": p["fc2_b"].reshape(1, 1),                                    # (1, 1) -> SMEM
    }


if __name__ == "__main__":
    key = jax.random.PRNGKey(0)
    pkey, xkey = jax.random.split(key)
    torch_params = init_params(pkey)
    params = pack_params(torch_params)

    def ref_fwd(x):
        # Plain-JAX reference, same math/layouts as the PyTorch forward.
        h = jnp.maximum(x @ torch_params["fc1_w"].T + torch_params["fc1_b"], 0.0)
        return jax.nn.sigmoid(h @ torch_params["fc2_w"].T + torch_params["fc2_b"])

    fwd = jax.jit(belief_state_discriminator, static_argnames=("tm",))

    # (batch, tm): 16 -> single aligned tile; 13 -> ragged (non-multiple-of-8)
    # single tile; 100 @ tm=64 -> multi-tile grid with a ragged last block
    # (exercises the no-pad masking path the review asked to verify).
    for batch, tm in [(16, None), (13, None), (100, 64)]:
        x = jax.random.normal(jax.random.fold_in(xkey, batch),
                              (batch, BS_SIZE), jnp.float32)
        out = fwd(x, params) if tm is None else fwd(x, params, tm=tm)
        out = jax.block_until_ready(out)

        assert out.shape == (batch, 1), out.shape
        assert bool(jnp.all(jnp.isfinite(out)))
        assert bool(jnp.all((out > 0.0) & (out < 1.0)))
        ref = ref_fwd(x)
        assert bool(jnp.allclose(out, ref, atol=1e-5, rtol=1e-5)), (
            batch, float(jnp.max(jnp.abs(out - ref))))

    print("KERNEL_OK")
</pallas_src>

<mosaic_0001>
module attributes {stable_mosaic.version = 11 : i64} {
  func.func @_disc_kernel(%arg0: i32, %arg1: memref<16x256xf32, #tpu.memory_space<vmem>>, %arg2: memref<256x64xf32, #tpu.memory_space<vmem>>, %arg3: memref<2x64xf32, #tpu.memory_space<vmem>>, %arg4: memref<1x1xf32, #tpu.memory_space<smem>>, %arg5: memref<16x1xf32, #tpu.memory_space<vmem>>) attributes {dimension_semantics = [#tpu.dimension_semantics<parallel>], iteration_bounds = array<i64: 1>, scalar_prefetch = 0 : i64, scratch_operands = 0 : i64, tpu.core_type = #tpu.core_type<tc>, window_params = [{transform_indices = @transform_0, window_bounds = array<i64: 16, 256>}, {pipeline_mode = #tpu.pipeline_mode<synchronous>, transform_indices = @transform_1, window_bounds = array<i64: 256, 64>}, {pipeline_mode = #tpu.pipeline_mode<synchronous>, transform_indices = @transform_2, window_bounds = array<i64: 2, 64>}, {transform_indices = @transform_3, window_bounds = array<i64: 1, 1>}, {transform_indices = @transform_4, window_bounds = array<i64: 16, 1>}]} {
    %c0 = arith.constant 0 : index
    %c0_0 = arith.constant 0 : index
    %0 = vector.load %arg1[%c0, %c0_0] : memref<16x256xf32, #tpu.memory_space<vmem>>, vector<16x256xf32>
    %c0_1 = arith.constant 0 : index
    %c0_2 = arith.constant 0 : index
    %1 = vector.load %arg2[%c0_1, %c0_2] : memref<256x64xf32, #tpu.memory_space<vmem>>, vector<256x64xf32>
    %cst = arith.constant dense<0.000000e+00> : vector<16x64xf32>
    %2 = tpu.matmul %0, %1, %cst {dimension_numbers = #tpu.dot_dimension_numbers<[1], [0], [0], [1], [0, 0, 1, 1], [], []>} : vector<16x256xf32>, vector<256x64xf32>, vector<16x64xf32> -> vector<16x64xf32>
    %c0_3 = arith.constant 0 : index
    %c0_4 = arith.constant 0 : index
    %3 = vector.load %arg3[%c0_3, %c0_4] : memref<2x64xf32, #tpu.memory_space<vmem>>, vector<1x64xf32>
    %4 = vector.broadcast %3 : vector<1x64xf32> to vector<16x64xf32>
    %5 = arith.addf %2, %4 : vector<16x64xf32>
    %cst_5 = arith.constant 0.000000e+00 : f32
    %6 = vector.broadcast %cst_5 : f32 to vector<16x64xf32>
    %7 = arith.maximumf %5, %6 : vector<16x64xf32>
    %c1 = arith.constant 1 : index
    %c0_6 = arith.constant 0 : index
    %8 = vector.load %arg3[%c1, %c0_6] : memref<2x64xf32, #tpu.memory_space<vmem>>, vector<1x64xf32>
    %9 = vector.broadcast %8 : vector<1x64xf32> to vector<16x64xf32>
    %10 = arith.mulf %7, %9 : vector<16x64xf32>
    %cst_7 = arith.constant dense<0.000000e+00> : vector<16xf32>
    %11 = vector.multi_reduction <add>, %10, %cst_7 [1] : vector<16x64xf32> to vector<16xf32>
    %12 = vector.shape_cast %11 : vector<16xf32> to vector<16x1xf32>
    %c0_8 = arith.constant 0 : index
    %c0_9 = arith.constant 0 : index
    %13 = memref.load %arg4[%c0_8, %c0_9] : memref<1x1xf32, #tpu.memory_space<smem>>
    %14 = vector.broadcast %13 : f32 to vector<16x1xf32>
    %15 = arith.addf %12, %14 : vector<16x1xf32>
    %16 = arith.negf %15 : vector<16x1xf32>
    %17 = math.exp %16 : vector<16x1xf32>
    %cst_10 = arith.constant 1.000000e+00 : f32
    %18 = vector.broadcast %cst_10 : f32 to vector<16x1xf32>
    %19 = arith.addf %18, %17 : vector<16x1xf32>
    %20 = arith.divf %18, %19 : vector<16x1xf32>
    %c0_11 = arith.constant 0 : index
    %c0_12 = arith.constant 0 : index
    %21 = vector.load %arg5[%c0_11, %c0_12] : memref<16x1xf32, #tpu.memory_space<vmem>>, vector<16x1xf32>
    tpu.vector_store %arg5[%c0_11, %c0_12], %20 {strides = array<i32>} : memref<16x1xf32, #tpu.memory_space<vmem>>, vector<16x1xf32>,
    return
  }
  func.func @transform_0(%arg0: i32) -> (i32, i32) {
    %c0_i32 = arith.constant 0 : i32
    %c0_i32_0 = arith.constant 0 : i32
    return %arg0, %c0_i32 : i32, i32
  }
  func.func @transform_1(%arg0: i32) -> (i32, i32) {
    %c0_i32 = arith.constant 0 : i32
    %c0_i32_0 = arith.constant 0 : i32
    %c0_i32_1 = arith.constant 0 : i32
    return %c0_i32, %c0_i32_0 : i32, i32
  }
  func.func @transform_2(%arg0: i32) -> (i32, i32) {
    %c0_i32 = arith.constant 0 : i32
    %c0_i32_0 = arith.constant 0 : i32
    %c0_i32_1 = arith.constant 0 : i32
    return %c0_i32, %c0_i32_0 : i32, i32
  }
  func.func @transform_3(%arg0: i32) -> (i32, i32) {
    %c0_i32 = arith.constant 0 : i32
    %c0_i32_0 = arith.constant 0 : i32
    %c0_i32_1 = arith.constant 0 : i32
    return %c0_i32, %c0_i32_0 : i32, i32
  }
  func.func @transform_4(%arg0: i32) -> (i32, i32) {
    %c0_i32 = arith.constant 0 : i32
    %c0_i32_0 = arith.constant 0 : i32
    return %arg0, %c0_i32 : i32, i32
  }
}

</mosaic_0001>

<llo_original>
// kernel: belief_state_discriminator.1
$region0: #{belief_state_discriminator.1}
  #allocation0 [shape = 'u32[]', space=smem, size = 0x4, offset = 0x4, fixed_abs, tag = 'smem constant byte address 0x4 - core index']
  #allocation1 [shape = 'u32[144,128]{1,0:T(1,128)}', space=vmem, size = 0x12000, scoped, tag = 'internal scratch']
  #allocation2 [shape = 'f32[1,1]{1,0:T(1,128)S(6)}', space=smem, size = 0x200, scoped, tag = 'scoped memory for belief_state_discriminator.1']
  %s0 = inlined_call_operand.vmem [shape: f32[16,256], index: 0, kind: input, shape index: {}]
  %s1 = inlined_call_operand.vmem [shape: f32[256,64], index: 1, kind: input, shape index: {}]
  %s2 = inlined_call_operand.vmem [shape: f32[2,64], index: 2, kind: input, shape index: {}]
  %s3 = inlined_call_operand.<no memory space> [shape: f32[1,1], index: 3, kind: input, shape index: {}]
  %s4 = inlined_call_operand.vmem [shape: f32[16,1], index: 4, kind: output, shape index: {}]
  %s5 = sld [smem:[#allocation0]]
  $region26: #{belief_state_discriminator.1} parent=0
    _
  %s7 = ssub.s32 1, %s5
  %s8 = scalar_select 0, %s7, %s5
  %9 = sst [smem:[#allocation2]] %s3
  // Predicated region
  $region2: #{belief_state_discriminator.1} parent=0 // pred_check
    _
  $region3: #{belief_state_discriminator.1} parent=0 // pred_check_branch
    %11 = sbr.rel (0) target = $region5
  $region4: #{belief_state_discriminator.1} parent=0 // pred_region
    _
  $region5: #{belief_state_discriminator.1} parent=0 // pred_fallthru
    _
  // Predicated region
  $region6: #{belief_state_discriminator.1} parent=0 // pred_check
    _
  $region7: #{belief_state_discriminator.1} parent=0 // pred_check_branch
    %13 = sbr.rel (0) target = $region9
  $region8: #{belief_state_discriminator.1} parent=0 // pred_region
    _
  $region9: #{belief_state_discriminator.1} parent=0 // pred_fallthru
    _
  // Predicated region
  $region10: #{belief_state_discriminator.1} parent=0 // pred_check
    _
  $region11: #{belief_state_discriminator.1} parent=0 // pred_check_branch
    %15 = sbr.rel (0) target = $region13
  $region12: #{belief_state_discriminator.1} parent=0 // pred_region
    _
  $region13: #{belief_state_discriminator.1} parent=0 // pred_fallthru
    _
  // Predicated region
  $region14: #{belief_state_discriminator.1} parent=0 // pred_check
    _
  $region15: #{belief_state_discriminator.1} parent=0 // pred_check_branch
    %17 = sbr.rel (0) target = $region17
  $region16: #{belief_state_discriminator.1} parent=0 // pred_region
    _
  $region17: #{belief_state_discriminator.1} parent=0 // pred_fallthru
    _
  %v18 = vld [vmem:[%s0] sm:$0xff]
  %v19 = vld [vmem:[%s0 + $0x8] sm:$0xff]
  %v20 = vld [vmem:[%s0 + $0x10] sm:$0xff]
  %v21 = vld [vmem:[%s0 + $0x18] sm:$0xff]
  %v22 = vld [vmem:[%s1] sm:$0xff]
  %v23 = vld [vmem:[%s1 + $0x8] sm:$0xff]
  %v24 = vld [vmem:[%s1 + $0x10] sm:$0xff]
  %v25 = vld [vmem:[%s1 + $0x18] sm:$0xff]
  %v26 = vld [vmem:[%s1 + $0x20] sm:$0xff]
  %v27 = vld [vmem:[%s1 + $0x28] sm:$0xff]
  %v28 = vld [vmem:[%s1 + $0x30] sm:$0xff]
  %v29 = vld [vmem:[%s1 + $0x38] sm:$0xff]
  %v30 = vld [vmem:[%s1 + $0x40] sm:$0xff]
  %v31 = vld [vmem:[%s1 + $0x48] sm:$0xff]
  %v32 = vld [vmem:[%s1 + $0x50] sm:$0xff]
  %v33 = vld [vmem:[%s1 + $0x58] sm:$0xff]
  %v34 = vld [vmem:[%s1 + $0x60] sm:$0xff]
  %v35 = vld [vmem:[%s1 + $0x68] sm:$0xff]
  %v36 = vld [vmem:[%s1 + $0x70] sm:$0xff]
  %v37 = vld [vmem:[%s1 + $0x78] sm:$0xff]
  %v38 = vld [vmem:[%s1 + $0x80] sm:$0xff]
  %v39 = vld [vmem:[%s1 + $0x88] sm:$0xff]
  %v40 = vld [vmem:[%s1 + $0x90] sm:$0xff]
  %v41 = vld [vmem:[%s1 + $0x98] sm:$0xff]
  %v42 = vld [vmem:[%s1 + $0xa0] sm:$0xff]
  %v43 = vld [vmem:[%s1 + $0xa8] sm:$0xff]
  %v44 = vld [vmem:[%s1 + $0xb0] sm:$0xff]
  %v45 = vld [vmem:[%s1 + $0xb8] sm:$0xff]
  %v46 = vld [vmem:[%s1 + $0xc0] sm:$0xff]
  %v47 = vld [vmem:[%s1 + $0xc8] sm:$0xff]
  %v48 = vld [vmem:[%s1 + $0xd0] sm:$0xff]
  %v49 = vld [vmem:[%s1 + $0xd8] sm:$0xff]
  %v50 = vld [vmem:[%s1 + $0xe0] sm:$0xff]
  %v51 = vld [vmem:[%s1 + $0xe8] sm:$0xff]
  %v52 = vld [vmem:[%s1 + $0xf0] sm:$0xff]
  %v53 = vld [vmem:[%s1 + $0xf8] sm:$0xff]
  %v54 = vld [vmem:[%s2] sm:$0x1]
  %v55 = vlaneseq
  %v56 = vshrl.u32 %v55, 7
  %v57 = vsub.s32 0, %v56
  %v58 = vrot.slane %v54, %v57
  %59 = vmatprep.subr.mxu0 0.0
  %60 = vmatpush1.msra.mxu0 %v22
  %61 = vmatprep.subr.mxu0 0.0
  %62 = vmatpush1.msra.mxu0 %v23
  %63 = vmatprep.subr.mxu0 0.0
  %64 = vmatpush1.msra.mxu0 %v24
  %65 = vmatprep.subr.mxu0 0.0
  %66 = vmatpush1.msra.mxu0 %v25
  %67 = vmatprep.subr.mxu0 0.0
  %68 = vmatpush1.msra.mxu0 %v26
  %69 = vmatprep.subr.mxu0 0.0
  %70 = vmatpush1.msra.mxu0 %v27
  %71 = vmatprep.subr.mxu0 0.0
  %72 = vmatpush1.msra.mxu0 %v28
  %73 = vmatprep.subr.mxu0 0.0
  %74 = vmatpush1.msra.mxu0 %v29
  %75 = vmatprep.subr.mxu0 0.0
  %76 = vmatpush1.msra.mxu0 %v30
  %77 = vmatprep.subr.mxu0 0.0
  %78 = vmatpush1.msra.mxu0 %v31
  %79 = vmatprep.subr.mxu0 0.0
  %80 = vmatpush1.msra.mxu0 %v32
  %81 = vmatprep.subr.mxu0 0.0
  %82 = vmatpush1.msra.mxu0 %v33
  %83 = vmatprep.subr.mxu0 0.0
  %84 = vmatpush1.msra.mxu0 %v34
  %85 = vmatprep.subr.mxu0 0.0
  %86 = vmatpush1.msra.mxu0 %v35
  %87 = vmatprep.subr.mxu0 0.0
  %88 = vmatpush1.msra.mxu0 %v36
  %89 = vmatprep.subr.mxu0 0.0
  %90 = vmatpush1.msra.mxu0 %v37
  %91 = vmatprep.subr.mxu0 0.0
  %92 = vmatpush1.msra.mxu0 %v38
  %93 = vmatprep.subr.mxu0 0.0
  %94 = vmatpush1.msra.mxu0 %v39
  %95 = vmatprep.subr.mxu0 0.0
  %96 = vmatpush1.msra.mxu0 %v40
  %97 = vmatprep.subr.mxu0 0.0
  %98 = vmatpush1.msra.mxu0 %v41
  %99 = vmatprep.subr.mxu0 0.0
  %100 = vmatpush1.msra.mxu0 %v42
  %101 = vmatprep.subr.mxu0 0.0
  %102 = vmatpush1.msra.mxu0 %v43
  %103 = vmatprep.subr.mxu0 0.0
  %104 = vmatpush1.msra.mxu0 %v44
  %105 = vmatprep.subr.mxu0 0.0
  %106 = vmatpush1.msra.mxu0 %v45
  %107 = vmatprep.subr.mxu0 0.0
  %108 = vmatpush1.msra.mxu0 %v46
  %109 = vmatprep.subr.mxu0 0.0
  %110 = vmatpush1.msra.mxu0 %v47
  %111 = vmatprep.subr.mxu0 0.0
  %112 = vmatpush1.msra.mxu0 %v48
  %113 = vmatprep.subr.mxu0 0.0
  %114 = vmatpush1.msra.mxu0 %v49
  %115 = vmatprep.subr.mxu0 0.0
  %116 = vmatpush1.msra.mxu0 %v50
  %117 = vmatprep.subr.mxu0 0.0
  %118 = vmatpush1.msra.mxu0 %v51
  %119 = vmatprep.subr.mxu0 0.0
  %120 = vmatpush1.msra.mxu0 %v52
  %121 = vmatprep.subr.mxu0 0.0
  %122 = vmatpush1.msra.mxu0 %v53
  %123 = vmatprep.mubr.f32.mxu0 %v19
  %124 = vmatmul.mubr.f32.gmra.mrb[0].mxu0 %v18
  %v125 = vpop.f32.mrb[0].mxu0
  %v126 = vadd.f32 %v58, %v125
  %v127 = vpop.f32.mrb[0].mxu0
  %128 = vmatprep.mubr.f32.mxu0 %v21
  %129 = vmatmul.mubr.f32.gmra.mrb[0].mxu0 %v20
  %v130 = vpop.f32.mrb[0].mxu0
  %v131 = vadd.f32 %v58, %v130
  %v132 = vpop.f32.mrb[0].mxu0
  %133 = vdwg.mxu0
  %v134 = vmax.f32 %v126, 0.0
  %v135 = vmax.f32 %v131, 0.0
  %v136 = vld [vmem:[%s2 + $0x1] sm:$0x1]
  %v137 = vlaneseq
  %v138 = vshrl.u32 %v137, 7
  %v139 = vsub.s32 0, %v138
  %v140 = vrot.slane %v136, %v139
  %v141 = vmul.f32 %v134, %v140
  %v142 = vmul.f32 %v135, %v140
  %vm143 = vcmask 523264
  %v144 = vsel %vm143, %v141, 0.0
  %145 = vadd.xlane.f32.xlu0 %v144
  %v146 = vpop.xlane.xlu0 %145
  %v147 = vsel %vm143, %v142, 0.0
  %148 = vadd.xlane.f32.xlu0 %v147
  %v149 = vpop.xlane.xlu0 %148
  %s150 = sld [smem:[#allocation2]]
  %v151 = vstv %s150
  %v152 = vadd.f32 %v146, %v151
  %v153 = vadd.f32 %v149, %v151
  %v154 = vxor.u32 %v152, 2147483648
  %v155 = vxor.u32 %v153, 2147483648
  %v156 = vmul.f32 %v154, 1.442695
  %v157 = vpow.pop %v156
  %v158 = vmul.f32 %v155, 1.442695
  %v159 = vpow.pop %v158
  %v160 = vadd.f32 %v157, 1.0
  %v161 = vadd.f32 %v159, 1.0
  %v162 = vrcp.pop %v160
  %v163 = vmul.f32 1.0, %v162
  %v164 = vrcp.pop %v161
  %v165 = vmul.f32 1.0, %v164
  %vm166 = vcmask 7168
  %167 = vst.msk [vmem:[%s4] sm:$0xff] %vm166, %v163
  %168 = vst.msk [vmem:[%s4 + $0x8] sm:$0xff] %vm166, %v165
  // Predicated region
  $region18: #{belief_state_discriminator.1} parent=0 // pred_check
    _
  $region19: #{belief_state_discriminator.1} parent=0 // pred_check_branch
    %170 = sbr.rel (0) target = $region21
  $region20: #{belief_state_discriminator.1} parent=0 // pred_region
    _
  $region21: #{belief_state_discriminator.1} parent=0 // pred_fallthru
    _
  // Predicated region
  $region22: #{belief_state_discriminator.1} parent=0 // pred_check
    _
  $region23: #{belief_state_discriminator.1} parent=0 // pred_check_branch
    %172 = sbr.rel (0) target = $region25
  $region24: #{belief_state_discriminator.1} parent=0 // pred_region
    _
  $region25: #{belief_state_discriminator.1} parent=0 // pred_fallthru
    _

</llo_original>
